<compile_context>
chip_gen: v7x
topology: tpu7x:2x2x1
jax: 0.10.0
libtpu: 0.0.40
codegen_flags: <defaults>
</compile_context>

<pallas_src>
import math

import jax
import jax.numpy as jnp
from jax.experimental import pallas as pl
from jax.experimental.pallas import tpu as pltpu


def _round_up(x, m):
    return (x + m - 1) // m * m


def _erf(x):
    # Abramowitz & Stegun 7.1.26 rational approximation (max abs err ~1.5e-7).
    # Exact divide (no approximate reciprocal) to keep tight parity with
    # torch.nn.GELU()'s exact erf.
    p = 0.3275911
    a1, a2, a3, a4, a5 = (0.254829592, -0.284496736, 1.421413741,
                          -1.453152027, 1.061405429)
    z = jnp.abs(x)
    t = 1.0 / (1.0 + p * z)
    poly = ((((a5 * t + a4) * t + a3) * t + a2) * t + a1) * t
    r = 1.0 - poly * jnp.exp(-z * z)
    return jnp.where(x >= 0.0, r, -r)


def _gelu_exact(x):
    # PyTorch nn.GELU() default is the exact (erf-based) GELU.
    return 0.5 * x * (1.0 + _erf(x * (1.0 / math.sqrt(2.0))))


def mlp_kernel(x_ref, w1_ref, b1_ref, w2_ref, b2_ref, o_ref, acc_ref):
    h_step = pl.program_id(1)

    @pl.when(h_step == 0)
    def _init():
        acc_ref[...] = jnp.zeros_like(acc_ref)

    # Feed the MXU in the weights' dtype (bf16 in the default config); f32
    # accumulation via preferred_element_type.
    x = x_ref[...]
    if x.dtype != w1_ref.dtype:
        x = x.astype(w1_ref.dtype)
    h = jnp.dot(x, w1_ref[...], preferred_element_type=jnp.float32)
    h = h + b1_ref[...].astype(jnp.float32)
    h = _gelu_exact(h)                       # exact GELU, f32 elementwise math
    if h.dtype != w2_ref.dtype:
        h = h.astype(w2_ref.dtype)
    acc_ref[...] += jnp.dot(h, w2_ref[...], preferred_element_type=jnp.float32)

    @pl.when(h_step == pl.num_programs(1) - 1)
    def _store():
        # TODO(synk): nn.Dropout is identity in eval mode; training-mode torch
        # RNG parity is not reproduced here.
        o_ref[...] = (acc_ref[...] + b2_ref[...].astype(jnp.float32)).astype(o_ref.dtype)


def _vmem_budget_bytes():
    # Generation-aware cap: 75% of physical VMEM (v5e/v6e 128 MiB, v7x 64 MiB).
    cap = 64 << 20
    try:
        cap = int(pltpu.get_tpu_info().vmem_capacity_bytes)
    except Exception:
        pass
    return int(min(cap * 3 // 4, 100 << 20))


def mlp_forward(x, w1, b1, w2, b2, *, mxu_dtype=jnp.bfloat16, tile_m=512, tile_h=None):
    """ViT MLP forward.

    x: (B, S, E); w1: (E, H); b1: (H,); w2: (H, E); b2: (E,)  —  y = gelu(x@W1+b1)@W2+b2.
    mxu_dtype: dtype fed to both matmuls (accumulation always f32).  Default
        bf16 (native MXU rate on v5e/v6e/v7x, half the weight DMA/VMEM);
        pass None for exact f32 parity with the PyTorch module.
    tile_m: M-tile (sweepable; 512 is safe on all generations, 1024 viable on
        v6e's 128 MiB VMEM).  tile_h=None picks H residency/streaming by VMEM fit.
    """
    B, S, E = x.shape
    Ew, H = w1.shape
    assert Ew == E and w2.shape == (H, E) and b1.shape == (H,) and b2.shape == (E,)
    M = B * S

    x2 = x.reshape(M, E)
    if mxu_dtype is not None:
        w1 = w1.astype(mxu_dtype)
        w2 = w2.astype(mxu_dtype)
    b1r = b1.reshape(1, H).astype(jnp.float32)
    b2r = b2.reshape(1, E).astype(jnp.float32)

    act_bytes = jnp.dtype(x.dtype).itemsize
    w_bytes = jnp.dtype(w1.dtype).itemsize

    tm = _round_up(min(tile_m, _round_up(M, 8)), 8)
    budget = _vmem_budget_bytes()

    def vmem_est(th):
        # Conservative: every input double-buffered (Buffered(1) only helps).
        return int(
            4 * tm * E * act_bytes       # x + out tiles (double-buffered)
            + 4 * E * th * w_bytes       # W1 + W2 blocks (double-buffered)
            + 2 * (th + E) * 4           # biases
            + tm * E * 4                 # f32 output accumulator scratch
            + 4 * tm * th * 4            # f32 GELU temporaries on (tm, th)
        )

    if tile_h is not None:
        th = tile_h
    elif vmem_est(H) <= budget:
        th = H                            # weights fully VMEM-resident
    else:
        th = H
        cand = (min(H, 2048) // 128) * 128
        while cand >= 128:
            if H % cand == 0 and vmem_est(cand) <= budget:
                th = cand
                break
            cand -= 128
        # TODO(synk): if H has no fitting 128-multiple divisor, also shrink
        # tile_m / mask a ragged H tail instead of falling back to th == H.
    assert H % th == 0, "tile_h must divide H"

    n_m = pl.cdiv(M, tm)
    n_h = H // th
    resident = n_h == 1

    cost = pl.CostEstimate(
        flops=4 * M * E * H,                                  # two matmuls
        transcendentals=2 * M * H,                            # exp + divide in erf
        bytes_accessed=int(2 * M * E * act_bytes
                           + (1 if resident else n_m) * (2 * E * H + H + E) * w_bytes),
    )
    out_shape = jax.ShapeDtypeStruct((M, E), x.dtype)

    def build(single_buffer_constants):
        def spec(shape, index_map, constant):
            if single_buffer_constants and constant:
                # Constant-index blocks need no prefetch rotation: single
                # buffering halves their VMEM footprint.
                return pl.BlockSpec(shape, index_map, pipeline_mode=pl.Buffered(1))
            return pl.BlockSpec(shape, index_map)

        in_specs = [
            spec((tm, E), lambda i, h: (i, 0), constant=False),       # x rows
            spec((E, th), lambda i, h: (0, h), constant=resident),    # W1 cols
            spec((1, th), lambda i, h: (0, h), constant=resident),    # b1
            spec((th, E), lambda i, h: (h, 0), constant=resident),    # W2 rows
            spec((1, E), lambda i, h: (0, 0), constant=True),         # b2
        ]
        return pl.pallas_call(
            mlp_kernel,
            out_shape=out_shape,
            grid_spec=pltpu.PrefetchScalarGridSpec(
                num_scalar_prefetch=0,
                grid=(n_m, n_h),
                in_specs=in_specs,
                out_specs=pl.BlockSpec((tm, E), lambda i, h: (i, 0)),
                scratch_shapes=[pltpu.VMEM((tm, E), jnp.float32)],
            ),
            compiler_params=pltpu.CompilerParams(
                dimension_semantics=("parallel", "arbitrary"),
                vmem_limit_bytes=budget,
            ),
            cost_estimate=cost,
        )

    try:
        out = build(True)(x2, w1, b1r, w2, b2r)
    except Exception:
        # pipeline_mode / pl.Buffered(1) not supported by this jax version:
        # identical math with default double-buffered weight blocks.
        out = build(False)(x2, w1, b1r, w2, b2r)

    return out.reshape(B, S, E)


def init_params(key, embedding_size, mlp_ratio):
    """Deterministic init mirroring nn.Linear's default U(-1/sqrt(fan_in), ...)."""
    E = embedding_size
    H = mlp_ratio * embedding_size
    k1, k2, k3, k4 = jax.random.split(key, 4)
    bound1 = 1.0 / math.sqrt(E)
    bound2 = 1.0 / math.sqrt(H)
    w1 = jax.random.uniform(k1, (E, H), jnp.float32, -bound1, bound1)
    b1 = jax.random.uniform(k2, (H,), jnp.float32, -bound1, bound1)
    w2 = jax.random.uniform(k3, (H, E), jnp.float32, -bound2, bound2)
    b2 = jax.random.uniform(k4, (E,), jnp.float32, -bound2, bound2)
    return w1, b1, w2, b2


def mlp_reference(x, w1, b1, w2, b2, *, mxu_dtype=None):
    """Pure-JAX reference.  mxu_dtype=None == exact f32 PyTorch semantics;
    mxu_dtype=bf16 mirrors the kernel's mixed-precision matmuls."""
    xm = x if mxu_dtype is None else x.astype(mxu_dtype)
    w1m = w1 if mxu_dtype is None else w1.astype(mxu_dtype)
    w2m = w2 if mxu_dtype is None else w2.astype(mxu_dtype)
    h = jnp.dot(xm, w1m, preferred_element_type=jnp.float32) + b1
    h = 0.5 * h * (1.0 + jax.scipy.special.erf(h / math.sqrt(2.0)))
    hm = h if mxu_dtype is None else h.astype(mxu_dtype)
    y = jnp.dot(hm, w2m, preferred_element_type=jnp.float32) + b2
    return y.astype(x.dtype)


if __name__ == "__main__":
    config = {"embedding_size": 32, "mlp_ratio": 4, "hidden_dropout_prob": 0.1}
    B, S, E = 2, 8, config["embedding_size"]

    key = jax.random.PRNGKey(0)
    kx, kp = jax.random.split(key)
    x = jax.random.normal(kx, (B, S, E), dtype=jnp.float32)
    w1, b1, w2, b2 = init_params(kp, config["embedding_size"], config["mlp_ratio"])

    # 1) Exact f32 path: parity with the PyTorch module (exact erf GELU).
    out_f32 = jax.block_until_ready(mlp_forward(x, w1, b1, w2, b2, mxu_dtype=None))
    ref_f32 = mlp_reference(x, w1, b1, w2, b2)
    assert out_f32.shape == (B, S, E)
    assert jnp.allclose(out_f32, ref_f32, atol=5e-4, rtol=5e-4), "f32 path mismatch vs reference"

    # 2) Default production path (bf16-fed MXU, f32 accumulate) vs the matched
    #    mixed-precision reference.
    out_bf16 = jax.block_until_ready(mlp_forward(x, w1, b1, w2, b2))
    ref_bf16 = mlp_reference(x, w1, b1, w2, b2, mxu_dtype=jnp.bfloat16)
    assert out_bf16.shape == (B, S, E)
    assert jnp.allclose(out_bf16, ref_bf16, atol=5e-3, rtol=5e-3), "bf16 path mismatch vs reference"

    print("KERNEL_OK")
</pallas_src>

<mosaic_0001>
module attributes {stable_mosaic.version = 11 : i64} {
  func.func @mlp_kernel(%arg0: i32, %arg1: i32, %arg2: memref<16x32xf32, #tpu.memory_space<vmem>>, %arg3: memref<32x128xf32, #tpu.memory_space<vmem>>, %arg4: memref<1x128xf32, #tpu.memory_space<vmem>>, %arg5: memref<128x32xf32, #tpu.memory_space<vmem>>, %arg6: memref<1x32xf32, #tpu.memory_space<vmem>>, %arg7: memref<16x32xf32, #tpu.memory_space<vmem>>, %arg8: memref<16x32xf32, #tpu.memory_space<vmem>>) attributes {dimension_semantics = [#tpu.dimension_semantics<parallel>, #tpu.dimension_semantics<arbitrary>], iteration_bounds = array<i64: 1, 1>, scalar_prefetch = 0 : i64, scratch_operands = 1 : i64, tpu.core_type = #tpu.core_type<tc>, window_params = [{transform_indices = @transform_0, window_bounds = array<i64: 16, 32>}, {pipeline_mode = #tpu.pipeline_mode<synchronous>, transform_indices = @transform_1, window_bounds = array<i64: 32, 128>}, {pipeline_mode = #tpu.pipeline_mode<synchronous>, transform_indices = @transform_2, window_bounds = array<i64: 1, 128>}, {pipeline_mode = #tpu.pipeline_mode<synchronous>, transform_indices = @transform_3, window_bounds = array<i64: 128, 32>}, {pipeline_mode = #tpu.pipeline_mode<synchronous>, transform_indices = @transform_4, window_bounds = array<i64: 1, 32>}, {transform_indices = @transform_5, window_bounds = array<i64: 16, 32>}]} {
    %c0_i32 = arith.constant 0 : i32
    %0 = arith.cmpi eq, %arg1, %c0_i32 : i32
    %1 = arith.extui %0 : i1 to i32
    %c0_i32_0 = arith.constant 0 : i32
    %2 = arith.cmpi ne, %1, %c0_i32_0 : i32
    scf.if %2 {
      %cst_30 = arith.constant 0.000000e+00 : f32
      %57 = vector.broadcast %cst_30 : f32 to vector<16x32xf32>
      %c0_31 = arith.constant 0 : index
      %c0_32 = arith.constant 0 : index
      %58 = vector.load %arg8[%c0_31, %c0_32] : memref<16x32xf32, #tpu.memory_space<vmem>>, vector<16x32xf32>
      tpu.vector_store %arg8[%c0_31, %c0_32], %57 {strides = array<i32>} : memref<16x32xf32, #tpu.memory_space<vmem>>, vector<16x32xf32>,
    } else {
    }
    %c0 = arith.constant 0 : index
    %c0_1 = arith.constant 0 : index
    %3 = vector.load %arg2[%c0, %c0_1] : memref<16x32xf32, #tpu.memory_space<vmem>>, vector<16x32xf32>
    %c0_2 = arith.constant 0 : index
    %c0_3 = arith.constant 0 : index
    %4 = vector.load %arg3[%c0_2, %c0_3] : memref<32x128xf32, #tpu.memory_space<vmem>>, vector<32x128xf32>
    %cst = arith.constant dense<0.000000e+00> : vector<16x128xf32>
    %5 = tpu.matmul %3, %4, %cst {dimension_numbers = #tpu.dot_dimension_numbers<[1], [0], [0], [1], [0, 0, 1, 1], [], []>} : vector<16x32xf32>, vector<32x128xf32>, vector<16x128xf32> -> vector<16x128xf32>
    %c0_4 = arith.constant 0 : index
    %c0_5 = arith.constant 0 : index
    %6 = vector.load %arg4[%c0_4, %c0_5] : memref<1x128xf32, #tpu.memory_space<vmem>>, vector<1x128xf32>
    %7 = vector.broadcast %6 : vector<1x128xf32> to vector<16x128xf32>
    %8 = arith.addf %5, %7 : vector<16x128xf32>
    %cst_6 = arith.constant 5.000000e-01 : f32
    %9 = vector.broadcast %cst_6 : f32 to vector<16x128xf32>
    %10 = arith.mulf %9, %8 : vector<16x128xf32>
    %cst_7 = arith.constant 0.707106769 : f32
    %11 = vector.broadcast %cst_7 : f32 to vector<16x128xf32>
    %12 = arith.mulf %8, %11 : vector<16x128xf32>
    %13 = math.absf %12 : vector<16x128xf32>
    %cst_8 = arith.constant 0.327591091 : f32
    %14 = vector.broadcast %cst_8 : f32 to vector<16x128xf32>
    %15 = arith.mulf %14, %13 : vector<16x128xf32>
    %cst_9 = arith.constant 1.000000e+00 : f32
    %16 = vector.broadcast %cst_9 : f32 to vector<16x128xf32>
    %17 = arith.addf %16, %15 : vector<16x128xf32>
    %cst_10 = arith.constant 1.000000e+00 : f32
    %18 = vector.broadcast %cst_10 : f32 to vector<16x128xf32>
    %19 = arith.divf %18, %17 : vector<16x128xf32>
    %cst_11 = arith.constant 1.06140542 : f32
    %20 = vector.broadcast %cst_11 : f32 to vector<16x128xf32>
    %21 = arith.mulf %20, %19 : vector<16x128xf32>
    %cst_12 = arith.constant -1.45315206 : f32
    %22 = vector.broadcast %cst_12 : f32 to vector<16x128xf32>
    %23 = arith.addf %21, %22 : vector<16x128xf32>
    %24 = arith.mulf %23, %19 : vector<16x128xf32>
    %cst_13 = arith.constant 1.42141378 : f32
    %25 = vector.broadcast %cst_13 : f32 to vector<16x128xf32>
    %26 = arith.addf %24, %25 : vector<16x128xf32>
    %27 = arith.mulf %26, %19 : vector<16x128xf32>
    %cst_14 = arith.constant -0.284496725 : f32
    %28 = vector.broadcast %cst_14 : f32 to vector<16x128xf32>
    %29 = arith.addf %27, %28 : vector<16x128xf32>
    %30 = arith.mulf %29, %19 : vector<16x128xf32>
    %cst_15 = arith.constant 0.254829586 : f32
    %31 = vector.broadcast %cst_15 : f32 to vector<16x128xf32>
    %32 = arith.addf %30, %31 : vector<16x128xf32>
    %33 = arith.mulf %32, %19 : vector<16x128xf32>
    %cst_16 = arith.constant 0.000000e+00 : f32
    %34 = vector.broadcast %cst_16 : f32 to vector<16x128xf32>
    %35 = arith.subf %34, %13 : vector<16x128xf32>
    %36 = arith.mulf %35, %13 : vector<16x128xf32>
    %37 = math.exp %36 : vector<16x128xf32>
    %38 = arith.mulf %33, %37 : vector<16x128xf32>
    %cst_17 = arith.constant 1.000000e+00 : f32
    %39 = vector.broadcast %cst_17 : f32 to vector<16x128xf32>
    %40 = arith.subf %39, %38 : vector<16x128xf32>
    %cst_18 = arith.constant 0.000000e+00 : f32
    %41 = vector.broadcast %cst_18 : f32 to vector<16x128xf32>
    %42 = arith.cmpf oge, %12, %41 : vector<16x128xf32>
    %cst_19 = arith.constant 0.000000e+00 : f32
    %43 = vector.broadcast %cst_19 : f32 to vector<16x128xf32>
    %44 = arith.subf %43, %40 : vector<16x128xf32>
    %45 = arith.select %42, %40, %44 : vector<16x128xi1>, vector<16x128xf32>
    %cst_20 = arith.constant 1.000000e+00 : f32
    %46 = vector.broadcast %cst_20 : f32 to vector<16x128xf32>
    %47 = arith.addf %46, %45 : vector<16x128xf32>
    %48 = arith.mulf %10, %47 : vector<16x128xf32>
    %c0_21 = arith.constant 0 : index
    %c0_22 = arith.constant 0 : index
    %49 = vector.load %arg8[%c0_21, %c0_22] : memref<16x32xf32, #tpu.memory_space<vmem>>, vector<16x32xf32>
    %c0_23 = arith.constant 0 : index
    %c0_24 = arith.constant 0 : index
    %50 = vector.load %arg5[%c0_23, %c0_24] : memref<128x32xf32, #tpu.memory_space<vmem>>, vector<128x32xf32>
    %cst_25 = arith.constant dense<0.000000e+00> : vector<16x32xf32>
    %51 = tpu.matmul %48, %50, %cst_25 {dimension_numbers = #tpu.dot_dimension_numbers<[1], [0], [0], [1], [0, 0, 1, 1], [], []>} : vector<16x128xf32>, vector<128x32xf32>, vector<16x32xf32> -> vector<16x32xf32>
    %52 = arith.addf %49, %51 : vector<16x32xf32>
    %c0_26 = arith.constant 0 : index
    %c0_27 = arith.constant 0 : index
    %53 = vector.load %arg8[%c0_26, %c0_27] : memref<16x32xf32, #tpu.memory_space<vmem>>, vector<16x32xf32>
    tpu.vector_store %arg8[%c0_26, %c0_27], %52 {strides = array<i32>} : memref<16x32xf32, #tpu.memory_space<vmem>>, vector<16x32xf32>,
    %c0_i32_28 = arith.constant 0 : i32
    %54 = arith.cmpi eq, %arg1, %c0_i32_28 : i32
    %55 = arith.extui %54 : i1 to i32
    %c0_i32_29 = arith.constant 0 : i32
    %56 = arith.cmpi ne, %55, %c0_i32_29 : i32
    scf.if %56 {
      %c0_30 = arith.constant 0 : index
      %c0_31 = arith.constant 0 : index
      %57 = vector.load %arg8[%c0_30, %c0_31] : memref<16x32xf32, #tpu.memory_space<vmem>>, vector<16x32xf32>
      %c0_32 = arith.constant 0 : index
      %c0_33 = arith.constant 0 : index
      %58 = vector.load %arg6[%c0_32, %c0_33] : memref<1x32xf32, #tpu.memory_space<vmem>>, vector<1x32xf32>
      %59 = vector.broadcast %58 : vector<1x32xf32> to vector<16x32xf32>
      %60 = arith.addf %57, %59 : vector<16x32xf32>
      %c0_34 = arith.constant 0 : index
      %c0_35 = arith.constant 0 : index
      %61 = vector.load %arg7[%c0_34, %c0_35] : memref<16x32xf32, #tpu.memory_space<vmem>>, vector<16x32xf32>
      tpu.vector_store %arg7[%c0_34, %c0_35], %60 {strides = array<i32>} : memref<16x32xf32, #tpu.memory_space<vmem>>, vector<16x32xf32>,
    } else {
    }
    return
  }
  func.func @transform_0(%arg0: i32, %arg1: i32) -> (i32, i32) {
    %c0_i32 = arith.constant 0 : i32
    %c0_i32_0 = arith.constant 0 : i32
    return %arg0, %c0_i32 : i32, i32
  }
  func.func @transform_1(%arg0: i32, %arg1: i32) -> (i32, i32) {
    %c0_i32 = arith.constant 0 : i32
    %c0_i32_0 = arith.constant 0 : i32
    return %c0_i32, %arg1 : i32, i32
  }
  func.func @transform_2(%arg0: i32, %arg1: i32) -> (i32, i32) {
    %c0_i32 = arith.constant 0 : i32
    %c0_i32_0 = arith.constant 0 : i32
    return %c0_i32, %arg1 : i32, i32
  }
  func.func @transform_3(%arg0: i32, %arg1: i32) -> (i32, i32) {
    %c0_i32 = arith.constant 0 : i32
    %c0_i32_0 = arith.constant 0 : i32
    return %arg1, %c0_i32 : i32, i32
  }
  func.func @transform_4(%arg0: i32, %arg1: i32) -> (i32, i32) {
    %c0_i32 = arith.constant 0 : i32
    %c0_i32_0 = arith.constant 0 : i32
    %c0_i32_1 = arith.constant 0 : i32
    return %c0_i32, %c0_i32_0 : i32, i32
  }
  func.func @transform_5(%arg0: i32, %arg1: i32) -> (i32, i32) {
    %c0_i32 = arith.constant 0 : i32
    %c0_i32_0 = arith.constant 0 : i32
    return %arg0, %c0_i32 : i32, i32
  }
}

module attributes {stable_mosaic.version = 11 : i64} {
  func.func @mlp_kernel(%arg0: i32, %arg1: i32, %arg2: memref<16x32xf32, #tpu.memory_space<vmem>>, %arg3: memref<32x128xf32, #tpu.memory_space<vmem>>, %arg4: memref<1x128xf32, #tpu.memory_space<vmem>>, %arg5: memref<128x32xf32, #tpu.memory_space<vmem>>, %arg6: memref<1x32xf32, #tpu.memory_space<vmem>>, %arg7: memref<16x32xf32, #tpu.memory_space<vmem>>, %arg8: memref<16x32xf32, #tpu.memory_space<vmem>>) attributes {dimension_semantics = [#tpu.dimension_semantics<parallel>, #tpu.dimension_semantics<arbitrary>], iteration_bounds = array<i64: 1, 1>, scalar_prefetch = 0 : i64, scratch_operands = 1 : i64, tpu.core_type = #tpu.core_type<tc>, window_params = [{transform_indices = @transform_0, window_bounds = array<i64: 16, 32>}, {transform_indices = @transform_1, window_bounds = array<i64: 32, 128>}, {transform_indices = @transform_2, window_bounds = array<i64: 1, 128>}, {transform_indices = @transform_3, window_bounds = array<i64: 128, 32>}, {pipeline_mode = #tpu.pipeline_mode<synchronous>, transform_indices = @transform_4, window_bounds = array<i64: 1, 32>}, {transform_indices = @transform_5, window_bounds = array<i64: 16, 32>}]} {
    %c0_i32 = arith.constant 0 : i32
    %0 = arith.cmpi eq, %arg1, %c0_i32 : i32
    %1 = arith.extui %0 : i1 to i32
    %c0_i32_0 = arith.constant 0 : i32
    %2 = arith.cmpi ne, %1, %c0_i32_0 : i32
    scf.if %2 {
      %cst_30 = arith.constant 0.000000e+00 : f32
      %57 = vector.broadcast %cst_30 : f32 to vector<16x32xf32>
      %c0_31 = arith.constant 0 : index
      %c0_32 = arith.constant 0 : index
      %58 = vector.load %arg8[%c0_31, %c0_32] : memref<16x32xf32, #tpu.memory_space<vmem>>, vector<16x32xf32>
      tpu.vector_store %arg8[%c0_31, %c0_32], %57 {strides = array<i32>} : memref<16x32xf32, #tpu.memory_space<vmem>>, vector<16x32xf32>,
    } else {
    }
    %c0 = arith.constant 0 : index
    %c0_1 = arith.constant 0 : index
    %3 = vector.load %arg2[%c0, %c0_1] : memref<16x32xf32, #tpu.memory_space<vmem>>, vector<16x32xf32>
    %c0_2 = arith.constant 0 : index
    %c0_3 = arith.constant 0 : index
    %4 = vector.load %arg3[%c0_2, %c0_3] : memref<32x128xf32, #tpu.memory_space<vmem>>, vector<32x128xf32>
    %cst = arith.constant dense<0.000000e+00> : vector<16x128xf32>
    %5 = tpu.matmul %3, %4, %cst {dimension_numbers = #tpu.dot_dimension_numbers<[1], [0], [0], [1], [0, 0, 1, 1], [], []>} : vector<16x32xf32>, vector<32x128xf32>, vector<16x128xf32> -> vector<16x128xf32>
    %c0_4 = arith.constant 0 : index
    %c0_5 = arith.constant 0 : index
    %6 = vector.load %arg4[%c0_4, %c0_5] : memref<1x128xf32, #tpu.memory_space<vmem>>, vector<1x128xf32>
    %7 = vector.broadcast %6 : vector<1x128xf32> to vector<16x128xf32>
    %8 = arith.addf %5, %7 : vector<16x128xf32>
    %cst_6 = arith.constant 5.000000e-01 : f32
    %9 = vector.broadcast %cst_6 : f32 to vector<16x128xf32>
    %10 = arith.mulf %9, %8 : vector<16x128xf32>
    %cst_7 = arith.constant 0.707106769 : f32
    %11 = vector.broadcast %cst_7 : f32 to vector<16x128xf32>
    %12 = arith.mulf %8, %11 : vector<16x128xf32>
    %13 = math.absf %12 : vector<16x128xf32>
    %cst_8 = arith.constant 0.327591091 : f32
    %14 = vector.broadcast %cst_8 : f32 to vector<16x128xf32>
    %15 = arith.mulf %14, %13 : vector<16x128xf32>
    %cst_9 = arith.constant 1.000000e+00 : f32
    %16 = vector.broadcast %cst_9 : f32 to vector<16x128xf32>
    %17 = arith.addf %16, %15 : vector<16x128xf32>
    %cst_10 = arith.constant 1.000000e+00 : f32
    %18 = vector.broadcast %cst_10 : f32 to vector<16x128xf32>
    %19 = arith.divf %18, %17 : vector<16x128xf32>
    %cst_11 = arith.constant 1.06140542 : f32
    %20 = vector.broadcast %cst_11 : f32 to vector<16x128xf32>
    %21 = arith.mulf %20, %19 : vector<16x128xf32>
    %cst_12 = arith.constant -1.45315206 : f32
    %22 = vector.broadcast %cst_12 : f32 to vector<16x128xf32>
    %23 = arith.addf %21, %22 : vector<16x128xf32>
    %24 = arith.mulf %23, %19 : vector<16x128xf32>
    %cst_13 = arith.constant 1.42141378 : f32
    %25 = vector.broadcast %cst_13 : f32 to vector<16x128xf32>
    %26 = arith.addf %24, %25 : vector<16x128xf32>
    %27 = arith.mulf %26, %19 : vector<16x128xf32>
    %cst_14 = arith.constant -0.284496725 : f32
    %28 = vector.broadcast %cst_14 : f32 to vector<16x128xf32>
    %29 = arith.addf %27, %28 : vector<16x128xf32>
    %30 = arith.mulf %29, %19 : vector<16x128xf32>
    %cst_15 = arith.constant 0.254829586 : f32
    %31 = vector.broadcast %cst_15 : f32 to vector<16x128xf32>
    %32 = arith.addf %30, %31 : vector<16x128xf32>
    %33 = arith.mulf %32, %19 : vector<16x128xf32>
    %cst_16 = arith.constant 0.000000e+00 : f32
    %34 = vector.broadcast %cst_16 : f32 to vector<16x128xf32>
    %35 = arith.subf %34, %13 : vector<16x128xf32>
    %36 = arith.mulf %35, %13 : vector<16x128xf32>
    %37 = math.exp %36 : vector<16x128xf32>
    %38 = arith.mulf %33, %37 : vector<16x128xf32>
    %cst_17 = arith.constant 1.000000e+00 : f32
    %39 = vector.broadcast %cst_17 : f32 to vector<16x128xf32>
    %40 = arith.subf %39, %38 : vector<16x128xf32>
    %cst_18 = arith.constant 0.000000e+00 : f32
    %41 = vector.broadcast %cst_18 : f32 to vector<16x128xf32>
    %42 = arith.cmpf oge, %12, %41 : vector<16x128xf32>
    %cst_19 = arith.constant 0.000000e+00 : f32
    %43 = vector.broadcast %cst_19 : f32 to vector<16x128xf32>
    %44 = arith.subf %43, %40 : vector<16x128xf32>
    %45 = arith.select %42, %40, %44 : vector<16x128xi1>, vector<16x128xf32>
    %cst_20 = arith.constant 1.000000e+00 : f32
    %46 = vector.broadcast %cst_20 : f32 to vector<16x128xf32>
    %47 = arith.addf %46, %45 : vector<16x128xf32>
    %48 = arith.mulf %10, %47 : vector<16x128xf32>
    %c0_21 = arith.constant 0 : index
    %c0_22 = arith.constant 0 : index
    %49 = vector.load %arg8[%c0_21, %c0_22] : memref<16x32xf32, #tpu.memory_space<vmem>>, vector<16x32xf32>
    %c0_23 = arith.constant 0 : index
    %c0_24 = arith.constant 0 : index
    %50 = vector.load %arg5[%c0_23, %c0_24] : memref<128x32xf32, #tpu.memory_space<vmem>>, vector<128x32xf32>
    %cst_25 = arith.constant dense<0.000000e+00> : vector<16x32xf32>
    %51 = tpu.matmul %48, %50, %cst_25 {dimension_numbers = #tpu.dot_dimension_numbers<[1], [0], [0], [1], [0, 0, 1, 1], [], []>} : vector<16x128xf32>, vector<128x32xf32>, vector<16x32xf32> -> vector<16x32xf32>
    %52 = arith.addf %49, %51 : vector<16x32xf32>
    %c0_26 = arith.constant 0 : index
    %c0_27 = arith.constant 0 : index
    %53 = vector.load %arg8[%c0_26, %c0_27] : memref<16x32xf32, #tpu.memory_space<vmem>>, vector<16x32xf32>
    tpu.vector_store %arg8[%c0_26, %c0_27], %52 {strides = array<i32>} : memref<16x32xf32, #tpu.memory_space<vmem>>, vector<16x32xf32>,
    %c0_i32_28 = arith.constant 0 : i32
    %54 = arith.cmpi eq, %arg1, %c0_i32_28 : i32
    %55 = arith.extui %54 : i1 to i32
    %c0_i32_29 = arith.constant 0 : i32
    %56 = arith.cmpi ne, %55, %c0_i32_29 : i32
    scf.if %56 {
      %c0_30 = arith.constant 0 : index
      %c0_31 = arith.constant 0 : index
      %57 = vector.load %arg8[%c0_30, %c0_31] : memref<16x32xf32, #tpu.memory_space<vmem>>, vector<16x32xf32>
      %c0_32 = arith.constant 0 : index
      %c0_33 = arith.constant 0 : index
      %58 = vector.load %arg6[%c0_32, %c0_33] : memref<1x32xf32, #tpu.memory_space<vmem>>, vector<1x32xf32>
      %59 = vector.broadcast %58 : vector<1x32xf32> to vector<16x32xf32>
      %60 = arith.addf %57, %59 : vector<16x32xf32>
      %c0_34 = arith.constant 0 : index
      %c0_35 = arith.constant 0 : index
      %61 = vector.load %arg7[%c0_34, %c0_35] : memref<16x32xf32, #tpu.memory_space<vmem>>, vector<16x32xf32>
      tpu.vector_store %arg7[%c0_34, %c0_35], %60 {strides = array<i32>} : memref<16x32xf32, #tpu.memory_space<vmem>>, vector<16x32xf32>,
    } else {
    }
    return
  }
  func.func @transform_0(%arg0: i32, %arg1: i32) -> (i32, i32) {
    %c0_i32 = arith.constant 0 : i32
    %c0_i32_0 = arith.constant 0 : i32
    return %arg0, %c0_i32 : i32, i32
  }
  func.func @transform_1(%arg0: i32, %arg1: i32) -> (i32, i32) {
    %c0_i32 = arith.constant 0 : i32
    %c0_i32_0 = arith.constant 0 : i32
    return %c0_i32, %arg1 : i32, i32
  }
  func.func @transform_2(%arg0: i32, %arg1: i32) -> (i32, i32) {
    %c0_i32 = arith.constant 0 : i32
    %c0_i32_0 = arith.constant 0 : i32
    return %c0_i32, %arg1 : i32, i32
  }
  func.func @transform_3(%arg0: i32, %arg1: i32) -> (i32, i32) {
    %c0_i32 = arith.constant 0 : i32
    %c0_i32_0 = arith.constant 0 : i32
    return %arg1, %c0_i32 : i32, i32
  }
  func.func @transform_4(%arg0: i32, %arg1: i32) -> (i32, i32) {
    %c0_i32 = arith.constant 0 : i32
    %c0_i32_0 = arith.constant 0 : i32
    %c0_i32_1 = arith.constant 0 : i32
    return %c0_i32, %c0_i32_0 : i32, i32
  }
  func.func @transform_5(%arg0: i32, %arg1: i32) -> (i32, i32) {
    %c0_i32 = arith.constant 0 : i32
    %c0_i32_0 = arith.constant 0 : i32
    return %arg0, %c0_i32 : i32, i32
  }
}

</mosaic_0001>

<llo_original>
// kernel: tpu_custom_call.1
$region0: #{tpu_custom_call.1}
  #allocation0 [shape = 'u32[]', space=smem, size = 0x4, offset = 0x4, fixed_abs, tag = 'smem constant byte address 0x4 - core index']
  #allocation1 [shape = 'u32[144,128]{1,0:T(1,128)}', space=vmem, size = 0x12000, scoped, tag = 'internal scratch']
  #allocation2 [shape = 'f32[16,32]{1,0:T(8,128)}', space=vmem, size = 0x2000, scoped, tag = 'scratch operand']
  %s0 = inlined_call_operand.vmem [shape: f32[16,32], index: 0, kind: input, shape index: {}]
  %s1 = inlined_call_operand.vmem [shape: f32[32,128], index: 1, kind: input, shape index: {}]
  %s2 = inlined_call_operand.vmem [shape: f32[1,128], index: 2, kind: input, shape index: {}]
  %s3 = inlined_call_operand.vmem [shape: f32[128,32], index: 3, kind: input, shape index: {}]
  %s4 = inlined_call_operand.vmem [shape: f32[1,32], index: 4, kind: input, shape index: {}]
  %s5 = inlined_call_operand.hbm [shape: f32[16,32], index: 5, kind: output, shape index: {}]
  %s6 = sld [smem:[#allocation0]]
  $region38: #{tpu_custom_call.1} parent=0
    _
  %s8 = ssub.s32 1, %s6
  %s9 = scalar_select 0, %s8, %s6
  $region1: #{tpu_custom_call.1} parent=0
    #allocation3 [shape = 'u8[8192]{0}', space=vmem, size = 0x2000, scoped, tag = 'output window, operand 0, single buffered']
    #allocation4 [shape = 's32[1]{0}', space=sflag, size = 0x4, scoped, tag = 'scoped memory for tpu_custom_call.1']
    %10 = vsyncpa [#allocation4], 0
    // Predicated region
    $region2: #{tpu_custom_call.1} parent=1 // pred_check
      _
    $region3: #{tpu_custom_call.1} parent=1 // pred_check_branch
      %12 = sbr.rel (0) target = $region5
    $region4: #{tpu_custom_call.1} parent=1 // pred_region
      _
    $region5: #{tpu_custom_call.1} parent=1 // pred_fallthru
      _
    // Predicated region
    $region6: #{tpu_custom_call.1} parent=1 // pred_check
      _
    $region7: #{tpu_custom_call.1} parent=1 // pred_check_branch
      %14 = sbr.rel (0) target = $region9
    $region8: #{tpu_custom_call.1} parent=1 // pred_region
      _
    $region9: #{tpu_custom_call.1} parent=1 // pred_fallthru
      _
    // Predicated region
    $region10: #{tpu_custom_call.1} parent=1 // pred_check
      _
    $region11: #{tpu_custom_call.1} parent=1 // pred_check_branch
      %16 = sbr.rel (0) target = $region13
    $region12: #{tpu_custom_call.1} parent=1 // pred_region
      _
    $region13: #{tpu_custom_call.1} parent=1 // pred_fallthru
      _
    // Predicated region
    $region14: #{tpu_custom_call.1} parent=1 // pred_check
      _
    $region15: #{tpu_custom_call.1} parent=1 // pred_check_branch
      %18 = sbr.rel (0) target = $region17
    $region16: #{tpu_custom_call.1} parent=1 // pred_region
      _
    $region17: #{tpu_custom_call.1} parent=1 // pred_fallthru
      _
    // Predicated region
    $region18: #{tpu_custom_call.1} parent=1 // pred_check
      _
    $region19: #{tpu_custom_call.1} parent=1 // pred_check_branch
      %20 = sbr.rel (0) target = $region21
    $region20: #{tpu_custom_call.1} parent=1 // pred_region
      _
    $region21: #{tpu_custom_call.1} parent=1 // pred_fallthru
      _
    %p21 = scmp.eq.s32.totalorder 0, 0
    // Predicated region
    $region22: #{tpu_custom_call.1} parent=1 // pred_check
      %p22 = pneg %p21
    $region23: #{tpu_custom_call.1} parent=1 // pred_check_branch
      %24 = sbr.rel (%p22) target = $region25
    $region24: #{tpu_custom_call.1} parent=1 // pred_region
      %vm25 = vcmask 261120
      %26 = vst.msk [vmem:[#allocation2] sm:$0xff] %vm25, 0.0
      %27 = vst.msk [vmem:[#allocation2 + $0x8] sm:$0xff] %vm25, 0.0
    $region25: #{tpu_custom_call.1} parent=1 // pred_fallthru
      _
    %v28 = vld [vmem:[%s0] sm:$0xff]
    %v29 = vld [vmem:[%s0 + $0x8] sm:$0xff]
    %v30 = vld [vmem:[%s1] sm:$0xff]
    %v31 = vld [vmem:[%s1 + $0x8] sm:$0xff]
    %v32 = vld [vmem:[%s1 + $0x10] sm:$0xff]
    %v33 = vld [vmem:[%s1 + $0x18] sm:$0xff]
    %v34 = vld [vmem:[%s2] sm:$0x1]
    %v36 = vlaneseq
    %v37 = vshrl.u32 %v36, 7
    %v38 = vsub.s32 0, %v37
    %v39 = vrot.slane %v34, %v38
    %vm41 = vcmask 261120
    %v43 = vsel %vm41, %v28, 0
    %v46 = vsel %vm41, %v29, 0
    %48 = vmatprep.subr.mxu0 0.0
    %49 = vmatpush1.msra.mxu0 %v30
    %50 = vmatprep.subr.mxu0 0.0
    %51 = vmatpush1.msra.mxu0 %v31
    %52 = vmatprep.subr.mxu0 0.0
    %53 = vmatpush1.msra.mxu0 %v32
    %54 = vmatprep.subr.mxu0 0.0
    %55 = vmatpush1.msra.mxu0 %v33
    %56 = vmatprep.subr.mxu0 0.0
    %57 = vmatpush1.msra.mxu0 0.0
    %58 = vmatprep.subr.mxu0 0.0
    %59 = vmatpush1.msra.mxu0 0.0
    %60 = vmatprep.subr.mxu0 0.0
    %61 = vmatpush1.msra.mxu0 0.0
    %62 = vmatprep.subr.mxu0 0.0
    %63 = vmatpush1.msra.mxu0 0.0
    %64 = vmatprep.subr.mxu0 0.0
    %65 = vmatpush1.msra.mxu0 0.0
    %66 = vmatprep.subr.mxu0 0.0
    %67 = vmatpush1.msra.mxu0 0.0
    %68 = vmatprep.subr.mxu0 0.0
    %69 = vmatpush1.msra.mxu0 0.0
    %70 = vmatprep.subr.mxu0 0.0
    %71 = vmatpush1.msra.mxu0 0.0
    %72 = vmatprep.subr.mxu0 0.0
    %73 = vmatpush1.msra.mxu0 0.0
    %74 = vmatprep.subr.mxu0 0.0
    %75 = vmatpush1.msra.mxu0 0.0
    %76 = vmatprep.subr.mxu0 0.0
    %77 = vmatpush1.msra.mxu0 0.0
    %78 = vmatprep.subr.mxu0 0.0
    %79 = vmatpush1.msra.mxu0 0.0
    %80 = vmatprep.subr.mxu0 0.0
    %81 = vmatpush1.msra.mxu0 0.0
    %82 = vmatprep.subr.mxu0 0.0
    %83 = vmatpush1.msra.mxu0 0.0
    %84 = vmatprep.subr.mxu0 0.0
    %85 = vmatpush1.msra.mxu0 0.0
    %86 = vmatprep.subr.mxu0 0.0
    %87 = vmatpush1.msra.mxu0 0.0
    %88 = vmatprep.subr.mxu0 0.0
    %89 = vmatpush1.msra.mxu0 0.0
    %90 = vmatprep.subr.mxu0 0.0
    %91 = vmatpush1.msra.mxu0 0.0
    %92 = vmatprep.subr.mxu0 0.0
    %93 = vmatpush1.msra.mxu0 0.0
    %94 = vmatprep.subr.mxu0 0.0
    %95 = vmatpush1.msra.mxu0 0.0
    %96 = vmatprep.subr.mxu0 0.0
    %97 = vmatpush1.msra.mxu0 0.0
    %98 = vmatprep.subr.mxu0 0.0
    %99 = vmatpush1.msra.mxu0 0.0
    %100 = vmatprep.subr.mxu0 0.0
    %101 = vmatpush1.msra.mxu0 0.0
    %102 = vmatprep.subr.mxu0 0.0
    %103 = vmatpush1.msra.mxu0 0.0
    %104 = vmatprep.subr.mxu0 0.0
    %105 = vmatpush1.msra.mxu0 0.0
    %106 = vmatprep.subr.mxu0 0.0
    %107 = vmatpush1.msra.mxu0 0.0
    %108 = vmatprep.subr.mxu0 0.0
    %109 = vmatpush1.msra.mxu0 0.0
    %110 = vmatprep.subr.mxu0 0.0
    %111 = vmatpush1.msra.mxu0 0.0
    %112 = vmatprep.mubr.f32.mxu0 0.0
    %113 = vmatmul.mubr.f32.gmra.mrb[0].mxu0 %v43
    %v114 = vpop.f32.mrb[0].mxu0
    %v115 = vadd.f32 %v39, %v114
    %v116 = vpop.f32.mrb[0].mxu0
    %117 = vmatprep.mubr.f32.mxu0 0.0
    %118 = vmatmul.mubr.f32.gmra.mrb[0].mxu0 %v46
    %v119 = vpop.f32.mrb[0].mxu0
    %v120 = vadd.f32 %v39, %v119
    %v121 = vpop.f32.mrb[0].mxu0
    %122 = vdwg.mxu0
    %v123 = vmul.f32 %v115, 0.5
    %v124 = vmul.f32 %v120, 0.5
    %v125 = vmul.f32 %v115, 0.70710677
    %v126 = vmul.f32 %v120, 0.70710677
    %v127 = vand.u32 2147483647, %v125
    %v128 = vand.u32 2147483647, %v126
    %v129 = vmul.f32 %v127, 0.3275911
    %v130 = vmul.f32 %v128, 0.3275911
    %v131 = vadd.f32 %v129, 1.0
    %v132 = vadd.f32 %v130, 1.0
    %v133 = vrcp.pop %v131
    %v134 = vmul.f32 1.0, %v133
    %v135 = vrcp.pop %v132
    %v136 = vmul.f32 1.0, %v135
    %v137 = vmul.f32 %v134, 1.0614054
    %v138 = vmul.f32 %v136, 1.0614054
    %v139 = vadd.f32 %v137, -1.4531521
    %v140 = vadd.f32 %v138, -1.4531521
    %v141 = vmul.f32 %v139, %v134
    %v142 = vmul.f32 %v140, %v136
    %v143 = vadd.f32 %v141, 1.4214138
    %v144 = vadd.f32 %v142, 1.4214138
    %v145 = vmul.f32 %v143, %v134
    %v146 = vmul.f32 %v144, %v136
    %v147 = vadd.f32 %v145, -0.28449672
    %v148 = vadd.f32 %v146, -0.28449672
    %v149 = vmul.f32 %v147, %v134
    %v150 = vmul.f32 %v148, %v136
    %v151 = vadd.f32 %v149, 0.2548296
    %v152 = vadd.f32 %v150, 0.2548296
    %v153 = vmul.f32 %v151, %v134
    %v154 = vmul.f32 %v152, %v136
    %v155 = vsub.f32 0.0, %v127
    %v156 = vsub.f32 0.0, %v128
    %v157 = vmul.f32 %v155, %v127
    %v158 = vmul.f32 %v156, %v128
    %v159 = vmul.f32 %v157, 1.442695
    %v160 = vpow.pop %v159
    %v161 = vmul.f32 %v158, 1.442695
    %v162 = vpow.pop %v161
    %v163 = vmul.f32 %v153, %v160
    %v164 = vmul.f32 %v154, %v162
    %v165 = vsub.f32 1.0, %v163
    %v166 = vsub.f32 1.0, %v164
    %vm167 = vcmp.ge.f32.partialorder %v125, 0.0
    %vm168 = vcmp.ge.f32.partialorder %v126, 0.0
    %v169 = vsub.f32 0.0, %v165
    %v170 = vsub.f32 0.0, %v166
    %v171 = vsel %vm167, %v165, %v169
    %v172 = vsel %vm168, %v166, %v170
    %v173 = vadd.f32 %v171, 1.0
    %v174 = vadd.f32 %v172, 1.0
    %v175 = vmul.f32 %v123, %v173
    %v176 = vmul.f32 %v124, %v174
    %v177 = vld [vmem:[#allocation2] sm:$0xff]
    %v178 = vld [vmem:[#allocation2 + $0x8] sm:$0xff]
    %v179 = vld [vmem:[%s3] sm:$0xff]
    %v180 = vld [vmem:[%s3 + $0x8] sm:$0xff]
    %v181 = vld [vmem:[%s3 + $0x10] sm:$0xff]
    %v182 = vld [vmem:[%s3 + $0x18] sm:$0xff]
    %v183 = vld [vmem:[%s3 + $0x20] sm:$0xff]
    %v184 = vld [vmem:[%s3 + $0x28] sm:$0xff]
    %v185 = vld [vmem:[%s3 + $0x30] sm:$0xff]
    %v186 = vld [vmem:[%s3 + $0x38] sm:$0xff]
    %v187 = vld [vmem:[%s3 + $0x40] sm:$0xff]
    %v188 = vld [vmem:[%s3 + $0x48] sm:$0xff]
    %v189 = vld [vmem:[%s3 + $0x50] sm:$0xff]
    %v190 = vld [vmem:[%s3 + $0x58] sm:$0xff]
    %v191 = vld [vmem:[%s3 + $0x60] sm:$0xff]
    %v192 = vld [vmem:[%s3 + $0x68] sm:$0xff]
    %v193 = vld [vmem:[%s3 + $0x70] sm:$0xff]
    %v194 = vld [vmem:[%s3 + $0x78] sm:$0xff]
    %195 = vmatprep.subr.mxu0 0.0
    %196 = vmatpush1.msra.mxu0 %v179
    %197 = vmatprep.subr.mxu0 0.0
    %198 = vmatpush1.msra.mxu0 %v180
    %199 = vmatprep.subr.mxu0 0.0
    %200 = vmatpush1.msra.mxu0 %v181
    %201 = vmatprep.subr.mxu0 0.0
    %202 = vmatpush1.msra.mxu0 %v182
    %203 = vmatprep.subr.mxu0 0.0
    %204 = vmatpush1.msra.mxu0 %v183
    %205 = vmatprep.subr.mxu0 0.0
    %206 = vmatpush1.msra.mxu0 %v184
    %207 = vmatprep.subr.mxu0 0.0
    %208 = vmatpush1.msra.mxu0 %v185
    %209 = vmatprep.subr.mxu0 0.0
    %210 = vmatpush1.msra.mxu0 %v186
    %211 = vmatprep.subr.mxu0 0.0
    %212 = vmatpush1.msra.mxu0 %v187
    %213 = vmatprep.subr.mxu0 0.0
    %214 = vmatpush1.msra.mxu0 %v188
    %215 = vmatprep.subr.mxu0 0.0
    %216 = vmatpush1.msra.mxu0 %v189
    %217 = vmatprep.subr.mxu0 0.0
    %218 = vmatpush1.msra.mxu0 %v190
    %219 = vmatprep.subr.mxu0 0.0
    %220 = vmatpush1.msra.mxu0 %v191
    %221 = vmatprep.subr.mxu0 0.0
    %222 = vmatpush1.msra.mxu0 %v192
    %223 = vmatprep.subr.mxu0 0.0
    %224 = vmatpush1.msra.mxu0 %v193
    %225 = vmatprep.subr.mxu0 0.0
    %226 = vmatpush1.msra.mxu0 %v194
    %227 = vmatprep.subr.mxu0 0.0
    %228 = vmatpush1.msra.mxu0 0.0
    %229 = vmatprep.subr.mxu0 0.0
    %230 = vmatpush1.msra.mxu0 0.0
    %231 = vmatprep.subr.mxu0 0.0
    %232 = vmatpush1.msra.mxu0 0.0
    %233 = vmatprep.subr.mxu0 0.0
    %234 = vmatpush1.msra.mxu0 0.0
    %235 = vmatprep.subr.mxu0 0.0
    %236 = vmatpush1.msra.mxu0 0.0
    %237 = vmatprep.subr.mxu0 0.0
    %238 = vmatpush1.msra.mxu0 0.0
    %239 = vmatprep.subr.mxu0 0.0
    %240 = vmatpush1.msra.mxu0 0.0
    %241 = vmatprep.subr.mxu0 0.0
    %242 = vmatpush1.msra.mxu0 0.0
    %243 = vmatprep.subr.mxu0 0.0
    %244 = vmatpush1.msra.mxu0 0.0
    %245 = vmatprep.subr.mxu0 0.0
    %246 = vmatpush1.msra.mxu0 0.0
    %247 = vmatprep.subr.mxu0 0.0
    %248 = vmatpush1.msra.mxu0 0.0
    %249 = vmatprep.subr.mxu0 0.0
    %250 = vmatpush1.msra.mxu0 0.0
    %251 = vmatprep.subr.mxu0 0.0
    %252 = vmatpush1.msra.mxu0 0.0
    %253 = vmatprep.subr.mxu0 0.0
    %254 = vmatpush1.msra.mxu0 0.0
    %255 = vmatprep.subr.mxu0 0.0
    %256 = vmatpush1.msra.mxu0 0.0
    %257 = vmatprep.subr.mxu0 0.0
    %258 = vmatpush1.msra.mxu0 0.0
    %259 = vmatprep.mubr.f32.mxu0 0.0
    %260 = vmatmul.mubr.f32.gmra.mrb[0].mxu0 %v175
    %v261 = vpop.f32.mrb[0].mxu0
    %v262 = vadd.f32 0.0, %v261
    %v263 = vpop.f32.mrb[0].mxu0
    %264 = vmatprep.mubr.f32.mxu0 0.0
    %265 = vmatmul.mubr.f32.gmra.mrb[0].mxu0 %v176
    %v266 = vpop.f32.mrb[0].mxu0
    %v267 = vadd.f32 0.0, %v266
    %v268 = vpop.f32.mrb[0].mxu0
    %269 = vdwg.mxu0
    %v270 = vadd.f32 %v177, %v262
    %v271 = vadd.f32 %v178, %v267
    %272 = vst.msk [vmem:[#allocation2] sm:$0xff] %vm41, %v270
    %273 = vst.msk [vmem:[#allocation2 + $0x8] sm:$0xff] %vm41, %v271
    // Predicated region
    $region26: #{tpu_custom_call.1} parent=1 // pred_check
      %p274 = pneg %p21
    $region27: #{tpu_custom_call.1} parent=1 // pred_check_branch
      %276 = sbr.rel (%p274) target = $region29
    $region28: #{tpu_custom_call.1} parent=1 // pred_region
      %v277 = vld [vmem:[#allocation2] sm:$0xff]
      %v278 = vld [vmem:[#allocation2 + $0x8] sm:$0xff]
      %v279 = vld [vmem:[%s4] sm:$0x1]
      %v281 = vlaneseq
      %v282 = vshrl.u32 %v281, 7
      %v283 = vsub.s32 0, %v282
      %v284 = vrot.slane %v279, %v283
      %v286 = vadd.f32 %v277, %v284
      %v287 = vadd.f32 %v278, %v284
      %288 = vst.msk [vmem:[#allocation3] sm:$0xff] %vm41, %v286
      %289 = vst.msk [vmem:[#allocation3 + $0x8] sm:$0xff] %vm41, %v287
    $region29: #{tpu_custom_call.1} parent=1 // pred_fallthru
      _
    // Predicated region
    $region30: #{tpu_custom_call.1} parent=1 // pred_check
      _
    $region31: #{tpu_custom_call.1} parent=1 // pred_check_branch
      %291 = sbr.rel (0) target = $region33
    $region32: #{tpu_custom_call.1} parent=1 // pred_region
      %s293 = ssub.s32 256, 256
      %294 = vsyncadd [#allocation4], %s293
      %s295 = sshll.u32 [#allocation3], 4
      %s296 = int_to_ptr.vmem [resolvable:$true] %s295
      %301 = dma.vmem_to_hbm [thread:$0]  %s296, 256, %s5, [#allocation4], 128, 128, 8
    $region33: #{tpu_custom_call.1} parent=1 // pred_fallthru
      _
    // Predicated region
    $region34: #{tpu_custom_call.1} parent=1 // pred_check
      _
    $region35: #{tpu_custom_call.1} parent=1 // pred_check_branch
      %303 = sbr.rel (0) target = $region37
    $region36: #{tpu_custom_call.1} parent=1 // pred_region
      %304 = dma.done [#allocation4], 256
    $region37: #{tpu_custom_call.1} parent=1 // pred_fallthru
      _
    %305 = vsyncpa [#allocation4], 1

// kernel: tpu_custom_call.1
$region0: #{tpu_custom_call.1}
  #allocation0 [shape = 'u32[]', space=smem, size = 0x4, offset = 0x4, fixed_abs, tag = 'smem constant byte address 0x4 - core index']
  #allocation1 [shape = 'u32[144,128]{1,0:T(1,128)}', space=vmem, size = 0x12000, scoped, tag = 'internal scratch']
  #allocation2 [shape = 'f32[16,32]{1,0:T(8,128)}', space=vmem, size = 0x2000, scoped, tag = 'scratch operand']
  %s0 = inlined_call_operand.vmem [shape: f32[16,32], index: 0, kind: input, shape index: {}]
  %s1 = inlined_call_operand.vmem [shape: f32[32,128], index: 1, kind: input, shape index: {}]
  %s2 = inlined_call_operand.vmem [shape: f32[1,128], index: 2, kind: input, shape index: {}]
  %s3 = inlined_call_operand.vmem [shape: f32[128,32], index: 3, kind: input, shape index: {}]
  %s4 = inlined_call_operand.vmem [shape: f32[1,32], index: 4, kind: input, shape index: {}]
  %s5 = inlined_call_operand.hbm [shape: f32[16,32], index: 5, kind: output, shape index: {}]
  %s6 = sld [smem:[#allocation0]]
  $region38: #{tpu_custom_call.1} parent=0
    _
  %s8 = ssub.s32 1, %s6
  %s9 = scalar_select 0, %s8, %s6
  $region1: #{tpu_custom_call.1} parent=0
    #allocation3 [shape = 'u8[8192]{0}', space=vmem, size = 0x2000, scoped, tag = 'output window, operand 0, single buffered']
    #allocation4 [shape = 's32[1]{0}', space=sflag, size = 0x4, scoped, tag = 'scoped memory for tpu_custom_call.1']
    %10 = vsyncpa [#allocation4], 0
    // Predicated region
    $region2: #{tpu_custom_call.1} parent=1 // pred_check
      _
    $region3: #{tpu_custom_call.1} parent=1 // pred_check_branch
      %12 = sbr.rel (0) target = $region5
    $region4: #{tpu_custom_call.1} parent=1 // pred_region
      _
    $region5: #{tpu_custom_call.1} parent=1 // pred_fallthru
      _
    // Predicated region
    $region6: #{tpu_custom_call.1} parent=1 // pred_check
      _
    $region7: #{tpu_custom_call.1} parent=1 // pred_check_branch
      %14 = sbr.rel (0) target = $region9
    $region8: #{tpu_custom_call.1} parent=1 // pred_region
      _
    $region9: #{tpu_custom_call.1} parent=1 // pred_fallthru
      _
    // Predicated region
    $region10: #{tpu_custom_call.1} parent=1 // pred_check
      _
    $region11: #{tpu_custom_call.1} parent=1 // pred_check_branch
      %16 = sbr.rel (0) target = $region13
    $region12: #{tpu_custom_call.1} parent=1 // pred_region
      _
    $region13: #{tpu_custom_call.1} parent=1 // pred_fallthru
      _
    // Predicated region
    $region14: #{tpu_custom_call.1} parent=1 // pred_check
      _
    $region15: #{tpu_custom_call.1} parent=1 // pred_check_branch
      %18 = sbr.rel (0) target = $region17
    $region16: #{tpu_custom_call.1} parent=1 // pred_region
      _
    $region17: #{tpu_custom_call.1} parent=1 // pred_fallthru
      _
    // Predicated region
    $region18: #{tpu_custom_call.1} parent=1 // pred_check
      _
    $region19: #{tpu_custom_call.1} parent=1 // pred_check_branch
      %20 = sbr.rel (0) target = $region21
    $region20: #{tpu_custom_call.1} parent=1 // pred_region
      _
    $region21: #{tpu_custom_call.1} parent=1 // pred_fallthru
      _
    %p21 = scmp.eq.s32.totalorder 0, 0
    // Predicated region
    $region22: #{tpu_custom_call.1} parent=1 // pred_check
      %p22 = pneg %p21
    $region23: #{tpu_custom_call.1} parent=1 // pred_check_branch
      %24 = sbr.rel (%p22) target = $region25
    $region24: #{tpu_custom_call.1} parent=1 // pred_region
      %vm25 = vcmask 261120
      %26 = vst.msk [vmem:[#allocation2] sm:$0xff] %vm25, 0.0
      %27 = vst.msk [vmem:[#allocation2 + $0x8] sm:$0xff] %vm25, 0.0
    $region25: #{tpu_custom_call.1} parent=1 // pred_fallthru
      _
    %v28 = vld [vmem:[%s0] sm:$0xff]
    %v29 = vld [vmem:[%s0 + $0x8] sm:$0xff]
    %v30 = vld [vmem:[%s1] sm:$0xff]
    %v31 = vld [vmem:[%s1 + $0x8] sm:$0xff]
    %v32 = vld [vmem:[%s1 + $0x10] sm:$0xff]
    %v33 = vld [vmem:[%s1 + $0x18] sm:$0xff]
    %v34 = vld [vmem:[%s2] sm:$0x1]
    %v36 = vlaneseq
    %v37 = vshrl.u32 %v36, 7
    %v38 = vsub.s32 0, %v37
    %v39 = vrot.slane %v34, %v38
    %vm41 = vcmask 261120
    %v43 = vsel %vm41, %v28, 0
    %v46 = vsel %vm41, %v29, 0
    %48 = vmatprep.subr.mxu0 0.0
    %49 = vmatpush1.msra.mxu0 %v30
    %50 = vmatprep.subr.mxu0 0.0
    %51 = vmatpush1.msra.mxu0 %v31
    %52 = vmatprep.subr.mxu0 0.0
    %53 = vmatpush1.msra.mxu0 %v32
    %54 = vmatprep.subr.mxu0 0.0
    %55 = vmatpush1.msra.mxu0 %v33
    %56 = vmatprep.subr.mxu0 0.0
    %57 = vmatpush1.msra.mxu0 0.0
    %58 = vmatprep.subr.mxu0 0.0
    %59 = vmatpush1.msra.mxu0 0.0
    %60 = vmatprep.subr.mxu0 0.0
    %61 = vmatpush1.msra.mxu0 0.0
    %62 = vmatprep.subr.mxu0 0.0
    %63 = vmatpush1.msra.mxu0 0.0
    %64 = vmatprep.subr.mxu0 0.0
    %65 = vmatpush1.msra.mxu0 0.0
    %66 = vmatprep.subr.mxu0 0.0
    %67 = vmatpush1.msra.mxu0 0.0
    %68 = vmatprep.subr.mxu0 0.0
    %69 = vmatpush1.msra.mxu0 0.0
    %70 = vmatprep.subr.mxu0 0.0
    %71 = vmatpush1.msra.mxu0 0.0
    %72 = vmatprep.subr.mxu0 0.0
    %73 = vmatpush1.msra.mxu0 0.0
    %74 = vmatprep.subr.mxu0 0.0
    %75 = vmatpush1.msra.mxu0 0.0
    %76 = vmatprep.subr.mxu0 0.0
    %77 = vmatpush1.msra.mxu0 0.0
    %78 = vmatprep.subr.mxu0 0.0
    %79 = vmatpush1.msra.mxu0 0.0
    %80 = vmatprep.subr.mxu0 0.0
    %81 = vmatpush1.msra.mxu0 0.0
    %82 = vmatprep.subr.mxu0 0.0
    %83 = vmatpush1.msra.mxu0 0.0
    %84 = vmatprep.subr.mxu0 0.0
    %85 = vmatpush1.msra.mxu0 0.0
    %86 = vmatprep.subr.mxu0 0.0
    %87 = vmatpush1.msra.mxu0 0.0
    %88 = vmatprep.subr.mxu0 0.0
    %89 = vmatpush1.msra.mxu0 0.0
    %90 = vmatprep.subr.mxu0 0.0
    %91 = vmatpush1.msra.mxu0 0.0
    %92 = vmatprep.subr.mxu0 0.0
    %93 = vmatpush1.msra.mxu0 0.0
    %94 = vmatprep.subr.mxu0 0.0
    %95 = vmatpush1.msra.mxu0 0.0
    %96 = vmatprep.subr.mxu0 0.0
    %97 = vmatpush1.msra.mxu0 0.0
    %98 = vmatprep.subr.mxu0 0.0
    %99 = vmatpush1.msra.mxu0 0.0
    %100 = vmatprep.subr.mxu0 0.0
    %101 = vmatpush1.msra.mxu0 0.0
    %102 = vmatprep.subr.mxu0 0.0
    %103 = vmatpush1.msra.mxu0 0.0
    %104 = vmatprep.subr.mxu0 0.0
    %105 = vmatpush1.msra.mxu0 0.0
    %106 = vmatprep.subr.mxu0 0.0
    %107 = vmatpush1.msra.mxu0 0.0
    %108 = vmatprep.subr.mxu0 0.0
    %109 = vmatpush1.msra.mxu0 0.0
    %110 = vmatprep.subr.mxu0 0.0
    %111 = vmatpush1.msra.mxu0 0.0
    %112 = vmatprep.mubr.f32.mxu0 0.0
    %113 = vmatmul.mubr.f32.gmra.mrb[0].mxu0 %v43
    %v114 = vpop.f32.mrb[0].mxu0
    %v115 = vadd.f32 %v39, %v114
    %v116 = vpop.f32.mrb[0].mxu0
    %117 = vmatprep.mubr.f32.mxu0 0.0
    %118 = vmatmul.mubr.f32.gmra.mrb[0].mxu0 %v46
    %v119 = vpop.f32.mrb[0].mxu0
    %v120 = vadd.f32 %v39, %v119
    %v121 = vpop.f32.mrb[0].mxu0
    %122 = vdwg.mxu0
    %v123 = vmul.f32 %v115, 0.5
    %v124 = vmul.f32 %v120, 0.5
    %v125 = vmul.f32 %v115, 0.70710677
    %v126 = vmul.f32 %v120, 0.70710677
    %v127 = vand.u32 2147483647, %v125
    %v128 = vand.u32 2147483647, %v126
    %v129 = vmul.f32 %v127, 0.3275911
    %v130 = vmul.f32 %v128, 0.3275911
    %v131 = vadd.f32 %v129, 1.0
    %v132 = vadd.f32 %v130, 1.0
    %v133 = vrcp.pop %v131
    %v134 = vmul.f32 1.0, %v133
    %v135 = vrcp.pop %v132
    %v136 = vmul.f32 1.0, %v135
    %v137 = vmul.f32 %v134, 1.0614054
    %v138 = vmul.f32 %v136, 1.0614054
    %v139 = vadd.f32 %v137, -1.4531521
    %v140 = vadd.f32 %v138, -1.4531521
    %v141 = vmul.f32 %v139, %v134
    %v142 = vmul.f32 %v140, %v136
    %v143 = vadd.f32 %v141, 1.4214138
    %v144 = vadd.f32 %v142, 1.4214138
    %v145 = vmul.f32 %v143, %v134
    %v146 = vmul.f32 %v144, %v136
    %v147 = vadd.f32 %v145, -0.28449672
    %v148 = vadd.f32 %v146, -0.28449672
    %v149 = vmul.f32 %v147, %v134
    %v150 = vmul.f32 %v148, %v136
    %v151 = vadd.f32 %v149, 0.2548296
    %v152 = vadd.f32 %v150, 0.2548296
    %v153 = vmul.f32 %v151, %v134
    %v154 = vmul.f32 %v152, %v136
    %v155 = vsub.f32 0.0, %v127
    %v156 = vsub.f32 0.0, %v128
    %v157 = vmul.f32 %v155, %v127
    %v158 = vmul.f32 %v156, %v128
    %v159 = vmul.f32 %v157, 1.442695
    %v160 = vpow.pop %v159
    %v161 = vmul.f32 %v158, 1.442695
    %v162 = vpow.pop %v161
    %v163 = vmul.f32 %v153, %v160
    %v164 = vmul.f32 %v154, %v162
    %v165 = vsub.f32 1.0, %v163
    %v166 = vsub.f32 1.0, %v164
    %vm167 = vcmp.ge.f32.partialorder %v125, 0.0
    %vm168 = vcmp.ge.f32.partialorder %v126, 0.0
    %v169 = vsub.f32 0.0, %v165
    %v170 = vsub.f32 0.0, %v166
    %v171 = vsel %vm167, %v165, %v169
    %v172 = vsel %vm168, %v166, %v170
    %v173 = vadd.f32 %v171, 1.0
    %v174 = vadd.f32 %v172, 1.0
    %v175 = vmul.f32 %v123, %v173
    %v176 = vmul.f32 %v124, %v174
    %v177 = vld [vmem:[#allocation2] sm:$0xff]
    %v178 = vld [vmem:[#allocation2 + $0x8] sm:$0xff]
    %v179 = vld [vmem:[%s3] sm:$0xff]
    %v180 = vld [vmem:[%s3 + $0x8] sm:$0xff]
    %v181 = vld [vmem:[%s3 + $0x10] sm:$0xff]
    %v182 = vld [vmem:[%s3 + $0x18] sm:$0xff]
    %v183 = vld [vmem:[%s3 + $0x20] sm:$0xff]
    %v184 = vld [vmem:[%s3 + $0x28] sm:$0xff]
    %v185 = vld [vmem:[%s3 + $0x30] sm:$0xff]
    %v186 = vld [vmem:[%s3 + $0x38] sm:$0xff]
    %v187 = vld [vmem:[%s3 + $0x40] sm:$0xff]
    %v188 = vld [vmem:[%s3 + $0x48] sm:$0xff]
    %v189 = vld [vmem:[%s3 + $0x50] sm:$0xff]
    %v190 = vld [vmem:[%s3 + $0x58] sm:$0xff]
    %v191 = vld [vmem:[%s3 + $0x60] sm:$0xff]
    %v192 = vld [vmem:[%s3 + $0x68] sm:$0xff]
    %v193 = vld [vmem:[%s3 + $0x70] sm:$0xff]
    %v194 = vld [vmem:[%s3 + $0x78] sm:$0xff]
    %195 = vmatprep.subr.mxu0 0.0
    %196 = vmatpush1.msra.mxu0 %v179
    %197 = vmatprep.subr.mxu0 0.0
    %198 = vmatpush1.msra.mxu0 %v180
    %199 = vmatprep.subr.mxu0 0.0
    %200 = vmatpush1.msra.mxu0 %v181
    %201 = vmatprep.subr.mxu0 0.0
    %202 = vmatpush1.msra.mxu0 %v182
    %203 = vmatprep.subr.mxu0 0.0
    %204 = vmatpush1.msra.mxu0 %v183
    %205 = vmatprep.subr.mxu0 0.0
    %206 = vmatpush1.msra.mxu0 %v184
    %207 = vmatprep.subr.mxu0 0.0
    %208 = vmatpush1.msra.mxu0 %v185
    %209 = vmatprep.subr.mxu0 0.0
    %210 = vmatpush1.msra.mxu0 %v186
    %211 = vmatprep.subr.mxu0 0.0
    %212 = vmatpush1.msra.mxu0 %v187
    %213 = vmatprep.subr.mxu0 0.0
    %214 = vmatpush1.msra.mxu0 %v188
    %215 = vmatprep.subr.mxu0 0.0
    %216 = vmatpush1.msra.mxu0 %v189
    %217 = vmatprep.subr.mxu0 0.0
    %218 = vmatpush1.msra.mxu0 %v190
    %219 = vmatprep.subr.mxu0 0.0
    %220 = vmatpush1.msra.mxu0 %v191
    %221 = vmatprep.subr.mxu0 0.0
    %222 = vmatpush1.msra.mxu0 %v192
    %223 = vmatprep.subr.mxu0 0.0
    %224 = vmatpush1.msra.mxu0 %v193
    %225 = vmatprep.subr.mxu0 0.0
    %226 = vmatpush1.msra.mxu0 %v194
    %227 = vmatprep.subr.mxu0 0.0
    %228 = vmatpush1.msra.mxu0 0.0
    %229 = vmatprep.subr.mxu0 0.0
    %230 = vmatpush1.msra.mxu0 0.0
    %231 = vmatprep.subr.mxu0 0.0
    %232 = vmatpush1.msra.mxu0 0.0
    %233 = vmatprep.subr.mxu0 0.0
    %234 = vmatpush1.msra.mxu0 0.0
    %235 = vmatprep.subr.mxu0 0.0
    %236 = vmatpush1.msra.mxu0 0.0
    %237 = vmatprep.subr.mxu0 0.0
    %238 = vmatpush1.msra.mxu0 0.0
    %239 = vmatprep.subr.mxu0 0.0
    %240 = vmatpush1.msra.mxu0 0.0
    %241 = vmatprep.subr.mxu0 0.0
    %242 = vmatpush1.msra.mxu0 0.0
    %243 = vmatprep.subr.mxu0 0.0
    %244 = vmatpush1.msra.mxu0 0.0
    %245 = vmatprep.subr.mxu0 0.0
    %246 = vmatpush1.msra.mxu0 0.0
    %247 = vmatprep.subr.mxu0 0.0
    %248 = vmatpush1.msra.mxu0 0.0
    %249 = vmatprep.subr.mxu0 0.0
    %250 = vmatpush1.msra.mxu0 0.0
    %251 = vmatprep.subr.mxu0 0.0
    %252 = vmatpush1.msra.mxu0 0.0
    %253 = vmatprep.subr.mxu0 0.0
    %254 = vmatpush1.msra.mxu0 0.0
    %255 = vmatprep.subr.mxu0 0.0
    %256 = vmatpush1.msra.mxu0 0.0
    %257 = vmatprep.subr.mxu0 0.0
    %258 = vmatpush1.msra.mxu0 0.0
    %259 = vmatprep.mubr.f32.mxu0 0.0
    %260 = vmatmul.mubr.f32.gmra.mrb[0].mxu0 %v175
    %v261 = vpop.f32.mrb[0].mxu0
    %v262 = vadd.f32 0.0, %v261
    %v263 = vpop.f32.mrb[0].mxu0
    %264 = vmatprep.mubr.f32.mxu0 0.0
    %265 = vmatmul.mubr.f32.gmra.mrb[0].mxu0 %v176
    %v266 = vpop.f32.mrb[0].mxu0
    %v267 = vadd.f32 0.0, %v266
    %v268 = vpop.f32.mrb[0].mxu0
    %269 = vdwg.mxu0
    %v270 = vadd.f32 %v177, %v262
    %v271 = vadd.f32 %v178, %v267
    %272 = vst.msk [vmem:[#allocation2] sm:$0xff] %vm41, %v270
    %273 = vst.msk [vmem:[#allocation2 + $0x8] sm:$0xff] %vm41, %v271
    // Predicated region
    $region26: #{tpu_custom_call.1} parent=1 // pred_check
      %p274 = pneg %p21
    $region27: #{tpu_custom_call.1} parent=1 // pred_check_branch
      %276 = sbr.rel (%p274) target = $region29
    $region28: #{tpu_custom_call.1} parent=1 // pred_region
      %v277 = vld [vmem:[#allocation2] sm:$0xff]
      %v278 = vld [vmem:[#allocation2 + $0x8] sm:$0xff]
      %v279 = vld [vmem:[%s4] sm:$0x1]
      %v281 = vlaneseq
      %v282 = vshrl.u32 %v281, 7
      %v283 = vsub.s32 0, %v282
      %v284 = vrot.slane %v279, %v283
      %v286 = vadd.f32 %v277, %v284
      %v287 = vadd.f32 %v278, %v284
      %288 = vst.msk [vmem:[#allocation3] sm:$0xff] %vm41, %v286
      %289 = vst.msk [vmem:[#allocation3 + $0x8] sm:$0xff] %vm41, %v287
    $region29: #{tpu_custom_call.1} parent=1 // pred_fallthru
      _
    // Predicated region
    $region30: #{tpu_custom_call.1} parent=1 // pred_check
      _
    $region31: #{tpu_custom_call.1} parent=1 // pred_check_branch
      %291 = sbr.rel (0) target = $region33
    $region32: #{tpu_custom_call.1} parent=1 // pred_region
      %s293 = ssub.s32 256, 256
      %294 = vsyncadd [#allocation4], %s293
      %s295 = sshll.u32 [#allocation3], 4
      %s296 = int_to_ptr.vmem [resolvable:$true] %s295
      %301 = dma.vmem_to_hbm [thread:$0]  %s296, 256, %s5, [#allocation4], 128, 128, 8
    $region33: #{tpu_custom_call.1} parent=1 // pred_fallthru
      _
    // Predicated region
    $region34: #{tpu_custom_call.1} parent=1 // pred_check
      _
    $region35: #{tpu_custom_call.1} parent=1 // pred_check_branch
      %303 = sbr.rel (0) target = $region37
    $region36: #{tpu_custom_call.1} parent=1 // pred_region
      %304 = dma.done [#allocation4], 256
    $region37: #{tpu_custom_call.1} parent=1 // pred_fallthru
      _
    %305 = vsyncpa [#allocation4], 1

</llo_original>
